<compile_context>
chip_gen: v5e
topology: v5e:2x2
jax: 0.10.0
libtpu: 0.0.40
codegen_flags: <defaults>
</compile_context>

<pallas_src>
import jax
import jax.numpy as jnp
from jax.experimental import pallas as pl
from jax.experimental.pallas import tpu as pltpu

LANE = 128   # lane width: weight-slab width + lane-padded final output channels
SUB = 8      # sublane multiple: node-feature channel pad (3 -> 8)


# ----------------------------- Pallas kernel --------------------------------

def _gnn_fused_kernel(a_ref, x_ref, w_ref, b_ref, o_ref):
    a = a_ref[...]          # (N, N) normalized adjacency, resident across grid
    x = x_ref[...]          # (N, 8)  sublane-padded features of this batch item

    # Static, sublane-aligned slices of the packed slabs.
    w1 = w_ref[0:8, 0:64]          # (8, 64)   rows 3:8 are zero (Cin pad)
    w2 = w_ref[8:72, 0:32]         # (64, 32)
    w3 = w_ref[72:104, 0:16]       # (32, 16)
    w4 = w_ref[104:120, :]         # (16, 128) lanes 1:128 are zero (Cout pad)
    b1 = b_ref[0:1, 0:64]
    b2 = b_ref[1:2, 0:32]
    b3 = b_ref[2:3, 0:16]
    b4 = b_ref[3:4, :]

    # Layer 1: AX-first (Cin=8 < Cout=64) -> narrow RHS for the (N, N) matmul.
    ax = jnp.dot(a, x, preferred_element_type=jnp.float32)
    h = jnp.maximum(
        jnp.dot(ax, w1, preferred_element_type=jnp.float32) + b1, 0.0)
    # TODO(synk): dropout after relu is identity (eval mode).

    # Layers 2-4: XW-first (Cout < Cin), then one (N, N) aggregation matmul.
    def layer(h, w, b, relu):
        xw = jnp.dot(h, w, preferred_element_type=jnp.float32)
        out = jnp.dot(a, xw, preferred_element_type=jnp.float32) + b
        return jnp.maximum(out, 0.0) if relu else out

    h = layer(h, w2, b2, True)     # conv2 + relu (+dropout = identity)
    h = layer(h, w3, b3, True)     # conv3 + relu
    h = layer(h, w4, b4, False)    # conv4 (lane-padded to 128 channels)
    o_ref[...] = h.astype(o_ref.dtype)   # full-lane (N, 128) unmasked store


def gnn_fused(a_hat, xb, wslab, bslab):
    """xb: (B, N, 8) padded features. Returns (B, N, LANE); logit in column 0."""
    B, n, cin_p = xb.shape

    per_item_flops = 2 * n * (n * cin_p + cin_p * 64        # layer 1
                              + 64 * 32 + n * 32            # layer 2
                              + 32 * 16 + n * 16            # layer 3
                              + 16 * LANE + n * LANE)       # layer 4 (padded)
    cost = pl.CostEstimate(
        flops=B * per_item_flops,
        transcendentals=0,
        bytes_accessed=4 * (n * n + B * n * cin_p + LANE * LANE
                            + SUB * LANE + B * n * LANE))

    return pl.pallas_call(
        _gnn_fused_kernel,
        out_shape=jax.ShapeDtypeStruct((B, n, LANE), jnp.float32),
        grid=(B,),
        in_specs=[
            pl.BlockSpec((n, n), lambda b: (0, 0)),            # A_hat, resident
            pl.BlockSpec((None, n, cin_p), lambda b: (b, 0, 0)),  # X, per item
            pl.BlockSpec((LANE, LANE), lambda b: (0, 0)),       # weight slab
            pl.BlockSpec((SUB, LANE), lambda b: (0, 0)),        # bias slab
        ],
        out_specs=pl.BlockSpec((None, n, LANE), lambda b: (b, 0, 0)),
        compiler_params=pltpu.CompilerParams(
            dimension_semantics=("parallel",),       # 2 TCs on v7x; no-op v5e/v6e
            vmem_limit_bytes=8 * 1024 * 1024,        # real footprint < 200 KiB
        ),
        cost_estimate=cost,
    )(a_hat, xb, wslab, bslab)


# ------------------------------- glue (JAX) ----------------------------------

def pack_params(params):
    """Pack W1..W4 / b1..b4 into one (128,128) and one (8,128) f32 slab."""
    (w1, b1), (w2, b2), (w3, b3), (w4, b4) = params
    wslab = jnp.zeros((LANE, LANE), jnp.float32)
    wslab = wslab.at[0:w1.shape[0], 0:64].set(w1)     # rows 3:8 stay zero
    wslab = wslab.at[8:72, 0:32].set(w2)
    wslab = wslab.at[72:104, 0:16].set(w3)
    wslab = wslab.at[104:120, 0:w4.shape[1]].set(w4)  # lanes 1:128 stay zero
    bslab = jnp.zeros((SUB, LANE), jnp.float32)
    bslab = bslab.at[0, 0:64].set(b1)
    bslab = bslab.at[1, 0:32].set(b2)
    bslab = bslab.at[2, 0:16].set(b3)
    bslab = bslab.at[3, 0:b4.shape[0]].set(b4)
    return wslab, bslab


def normalized_adjacency(edge_index, num_nodes):
    """Dense D^{-1/2}(A + I)D^{-1/2} from a (2, E) edge_index (src, dst).

    Built ONCE for a static graph (hoisted out of the per-forward path)."""
    a = jnp.zeros((num_nodes, num_nodes), jnp.float32)
    if edge_index.shape[1] > 0:
        src, dst = edge_index[0], edge_index[1]
        a = a.at[dst, src].add(1.0)       # message flows source -> target
    a = a + jnp.eye(num_nodes, dtype=jnp.float32)      # self loops
    deg = a.sum(axis=1)
    d_inv_sqrt = jnp.where(deg > 0, 1.0 / jnp.sqrt(deg), 0.0)
    return d_inv_sqrt[:, None] * a * d_inv_sqrt[None, :]


def glorot(key, shape):
    fan_in, fan_out = shape
    limit = jnp.sqrt(6.0 / (fan_in + fan_out))
    return jax.random.uniform(key, shape, jnp.float32, -limit, limit)


def init_params(key):
    dims = [(3, 64), (64, 32), (32, 16), (16, 1)]
    params = []
    for i, (cin, cout) in enumerate(dims):
        k = jax.random.fold_in(key, i)
        params.append((glorot(k, (cin, cout)), jnp.zeros((cout,), jnp.float32)))
    return params


@jax.jit
def gnn_forward(a_hat, x, params):
    """x: (N, 3) single graph features or (B, N, 3) batch; returns (..., N, 1)."""
    single = (x.ndim == 2)
    xb = x[None] if single else x
    B, n, cin = xb.shape
    xp = jnp.zeros((B, n, SUB), jnp.float32).at[:, :, :cin].set(xb)
    wslab, bslab = pack_params(params)
    out = gnn_fused(a_hat, xp, wslab, bslab)[:, :, :1]
    return out[0] if single else out


def gnn_reference(a_hat, x, params):
    """Pure-JAX reference of the 4-layer GCN (eval mode)."""
    h = x
    for i, (w, b) in enumerate(params):
        h = a_hat @ (h @ w) + b
        if i < len(params) - 1:
            h = jnp.maximum(h, 0.0)
    return h


# --------------------------------- main --------------------------------------

if __name__ == "__main__":
    key = jax.random.PRNGKey(0)
    k_x, k_p, k_b = jax.random.split(key, 3)

    num_nodes = 16
    batch = 4
    x = jax.random.normal(k_x, (num_nodes, 3), jnp.float32)
    x_batch = jax.random.normal(k_b, (batch, num_nodes, 3), jnp.float32)

    # small deterministic ring + chord graph (module's `edges` list is empty,
    # so we construct an example graph here)
    src = jnp.array([0, 1, 2, 3, 4, 5, 6, 7, 8, 9, 10, 11, 12, 13, 14, 15,
                     0, 4, 8, 12], dtype=jnp.int32)
    dst = jnp.array([1, 2, 3, 4, 5, 6, 7, 8, 9, 10, 11, 12, 13, 14, 15, 0,
                     8, 12, 0, 4], dtype=jnp.int32)
    edge_index = jnp.stack([src, dst], axis=0)

    params = init_params(k_p)

    # Precompute the normalized adjacency once (hoisted out of the forward).
    a_hat = jax.block_until_ready(normalized_adjacency(edge_index, num_nodes))

    # Single-graph call (matches the original module's forward signature).
    out1 = jax.block_until_ready(gnn_forward(a_hat, x, params))
    assert out1.shape == (num_nodes, 1)

    # Batched call exercising the grid=(B,) "parallel" axis.
    outB = jax.block_until_ready(gnn_forward(a_hat, x_batch, params))
    assert outB.shape == (batch, num_nodes, 1)

    # Correctness vs. pure-JAX reference.
    ref1 = gnn_reference(a_hat, x, params)
    refB = jax.vmap(lambda xi: gnn_reference(a_hat, xi, params))(x_batch)
    assert jnp.allclose(out1, ref1, atol=1e-4, rtol=1e-4)
    assert jnp.allclose(outB, refB, atol=1e-4, rtol=1e-4)

    print("KERNEL_OK")
</pallas_src>

<mosaic_0001>
module attributes {stable_mosaic.version = 11 : i64} {
  func.func @_gnn_fused_kernel(%arg0: i32, %arg1: memref<16x16xf32, #tpu.memory_space<vmem>>, %arg2: memref<1x16x8xf32, #tpu.memory_space<vmem>>, %arg3: memref<128x128xf32, #tpu.memory_space<vmem>>, %arg4: memref<8x128xf32, #tpu.memory_space<vmem>>, %arg5: memref<1x16x128xf32, #tpu.memory_space<vmem>>) attributes {dimension_semantics = [#tpu.dimension_semantics<parallel>], iteration_bounds = array<i64: 1>, scalar_prefetch = 0 : i64, scratch_operands = 0 : i64, tpu.core_type = #tpu.core_type<tc>, window_params = [{pipeline_mode = #tpu.pipeline_mode<synchronous>, transform_indices = @transform_0, window_bounds = array<i64: 16, 16>}, {transform_indices = @transform_1, window_bounds = array<i64: 1, 16, 8>}, {pipeline_mode = #tpu.pipeline_mode<synchronous>, transform_indices = @transform_2, window_bounds = array<i64: 128, 128>}, {pipeline_mode = #tpu.pipeline_mode<synchronous>, transform_indices = @transform_3, window_bounds = array<i64: 8, 128>}, {transform_indices = @transform_4, window_bounds = array<i64: 1, 16, 128>}]} {
    %c0 = arith.constant 0 : index
    %c0_0 = arith.constant 0 : index
    %0 = vector.load %arg1[%c0, %c0_0] : memref<16x16xf32, #tpu.memory_space<vmem>>, vector<16x16xf32>
    %c0_1 = arith.constant 0 : index
    %c0_2 = arith.constant 0 : index
    %c0_3 = arith.constant 0 : index
    %1 = vector.load %arg2[%c0_1, %c0_2, %c0_3] : memref<1x16x8xf32, #tpu.memory_space<vmem>>, vector<1x16x8xf32>
    %2 = vector.shape_cast %1 : vector<1x16x8xf32> to vector<16x8xf32>
    %c0_4 = arith.constant 0 : index
    %c0_5 = arith.constant 0 : index
    %3 = vector.load %arg3[%c0_4, %c0_5] : memref<128x128xf32, #tpu.memory_space<vmem>>, vector<8x64xf32>
    %c8 = arith.constant 8 : index
    %c0_6 = arith.constant 0 : index
    %4 = vector.load %arg3[%c8, %c0_6] : memref<128x128xf32, #tpu.memory_space<vmem>>, vector<64x32xf32>
    %c72 = arith.constant 72 : index
    %c0_7 = arith.constant 0 : index
    %5 = vector.load %arg3[%c72, %c0_7] : memref<128x128xf32, #tpu.memory_space<vmem>>, vector<32x16xf32>
    %c104 = arith.constant 104 : index
    %c0_8 = arith.constant 0 : index
    %6 = vector.load %arg3[%c104, %c0_8] : memref<128x128xf32, #tpu.memory_space<vmem>>, vector<16x128xf32>
    %c0_9 = arith.constant 0 : index
    %c0_10 = arith.constant 0 : index
    %7 = vector.load %arg4[%c0_9, %c0_10] : memref<8x128xf32, #tpu.memory_space<vmem>>, vector<1x64xf32>
    %c1 = arith.constant 1 : index
    %c0_11 = arith.constant 0 : index
    %8 = vector.load %arg4[%c1, %c0_11] : memref<8x128xf32, #tpu.memory_space<vmem>>, vector<1x32xf32>
    %c2 = arith.constant 2 : index
    %c0_12 = arith.constant 0 : index
    %9 = vector.load %arg4[%c2, %c0_12] : memref<8x128xf32, #tpu.memory_space<vmem>>, vector<1x16xf32>
    %c3 = arith.constant 3 : index
    %c0_13 = arith.constant 0 : index
    %10 = vector.load %arg4[%c3, %c0_13] : memref<8x128xf32, #tpu.memory_space<vmem>>, vector<1x128xf32>
    %cst = arith.constant dense<0.000000e+00> : vector<16x8xf32>
    %11 = tpu.matmul %0, %2, %cst {dimension_numbers = #tpu.dot_dimension_numbers<[1], [0], [0], [1], [0, 0, 1, 1], [], []>} : vector<16x16xf32>, vector<16x8xf32>, vector<16x8xf32> -> vector<16x8xf32>
    %cst_14 = arith.constant dense<0.000000e+00> : vector<16x64xf32>
    %12 = tpu.matmul %11, %3, %cst_14 {dimension_numbers = #tpu.dot_dimension_numbers<[1], [0], [0], [1], [0, 0, 1, 1], [], []>} : vector<16x8xf32>, vector<8x64xf32>, vector<16x64xf32> -> vector<16x64xf32>
    %13 = vector.broadcast %7 : vector<1x64xf32> to vector<16x64xf32>
    %14 = arith.addf %12, %13 : vector<16x64xf32>
    %cst_15 = arith.constant 0.000000e+00 : f32
    %15 = vector.broadcast %cst_15 : f32 to vector<16x64xf32>
    %16 = arith.maximumf %14, %15 : vector<16x64xf32>
    %cst_16 = arith.constant dense<0.000000e+00> : vector<16x32xf32>
    %17 = tpu.matmul %16, %4, %cst_16 {dimension_numbers = #tpu.dot_dimension_numbers<[1], [0], [0], [1], [0, 0, 1, 1], [], []>} : vector<16x64xf32>, vector<64x32xf32>, vector<16x32xf32> -> vector<16x32xf32>
    %cst_17 = arith.constant dense<0.000000e+00> : vector<16x32xf32>
    %18 = tpu.matmul %0, %17, %cst_17 {dimension_numbers = #tpu.dot_dimension_numbers<[1], [0], [0], [1], [0, 0, 1, 1], [], []>} : vector<16x16xf32>, vector<16x32xf32>, vector<16x32xf32> -> vector<16x32xf32>
    %19 = vector.broadcast %8 : vector<1x32xf32> to vector<16x32xf32>
    %20 = arith.addf %18, %19 : vector<16x32xf32>
    %cst_18 = arith.constant 0.000000e+00 : f32
    %21 = vector.broadcast %cst_18 : f32 to vector<16x32xf32>
    %22 = arith.maximumf %20, %21 : vector<16x32xf32>
    %cst_19 = arith.constant dense<0.000000e+00> : vector<16x16xf32>
    %23 = tpu.matmul %22, %5, %cst_19 {dimension_numbers = #tpu.dot_dimension_numbers<[1], [0], [0], [1], [0, 0, 1, 1], [], []>} : vector<16x32xf32>, vector<32x16xf32>, vector<16x16xf32> -> vector<16x16xf32>
    %cst_20 = arith.constant dense<0.000000e+00> : vector<16x16xf32>
    %24 = tpu.matmul %0, %23, %cst_20 {dimension_numbers = #tpu.dot_dimension_numbers<[1], [0], [0], [1], [0, 0, 1, 1], [], []>} : vector<16x16xf32>, vector<16x16xf32>, vector<16x16xf32> -> vector<16x16xf32>
    %25 = vector.broadcast %9 : vector<1x16xf32> to vector<16x16xf32>
    %26 = arith.addf %24, %25 : vector<16x16xf32>
    %cst_21 = arith.constant 0.000000e+00 : f32
    %27 = vector.broadcast %cst_21 : f32 to vector<16x16xf32>
    %28 = arith.maximumf %26, %27 : vector<16x16xf32>
    %cst_22 = arith.constant dense<0.000000e+00> : vector<16x128xf32>
    %29 = tpu.matmul %28, %6, %cst_22 {dimension_numbers = #tpu.dot_dimension_numbers<[1], [0], [0], [1], [0, 0, 1, 1], [], []>} : vector<16x16xf32>, vector<16x128xf32>, vector<16x128xf32> -> vector<16x128xf32>
    %cst_23 = arith.constant dense<0.000000e+00> : vector<16x128xf32>
    %30 = tpu.matmul %0, %29, %cst_23 {dimension_numbers = #tpu.dot_dimension_numbers<[1], [0], [0], [1], [0, 0, 1, 1], [], []>} : vector<16x16xf32>, vector<16x128xf32>, vector<16x128xf32> -> vector<16x128xf32>
    %31 = vector.broadcast %10 : vector<1x128xf32> to vector<16x128xf32>
    %32 = arith.addf %30, %31 : vector<16x128xf32>
    %c0_24 = arith.constant 0 : index
    %c0_25 = arith.constant 0 : index
    %c0_26 = arith.constant 0 : index
    %33 = vector.load %arg5[%c0_24, %c0_25, %c0_26] : memref<1x16x128xf32, #tpu.memory_space<vmem>>, vector<1x16x128xf32>
    %34 = vector.shape_cast %33 : vector<1x16x128xf32> to vector<16x128xf32>
    %35 = vector.shape_cast %32 : vector<16x128xf32> to vector<1x16x128xf32>
    tpu.vector_store %arg5[%c0_24, %c0_25, %c0_26], %35 {strides = array<i32>} : memref<1x16x128xf32, #tpu.memory_space<vmem>>, vector<1x16x128xf32>,
    return
  }
  func.func @transform_0(%arg0: i32) -> (i32, i32) {
    %c0_i32 = arith.constant 0 : i32
    %c0_i32_0 = arith.constant 0 : i32
    %c0_i32_1 = arith.constant 0 : i32
    return %c0_i32, %c0_i32_0 : i32, i32
  }
  func.func @transform_1(%arg0: i32) -> (i32, i32, i32) {
    %c0_i32 = arith.constant 0 : i32
    %c0_i32_0 = arith.constant 0 : i32
    %c0_i32_1 = arith.constant 0 : i32
    return %arg0, %c0_i32, %c0_i32_0 : i32, i32, i32
  }
  func.func @transform_2(%arg0: i32) -> (i32, i32) {
    %c0_i32 = arith.constant 0 : i32
    %c0_i32_0 = arith.constant 0 : i32
    %c0_i32_1 = arith.constant 0 : i32
    return %c0_i32, %c0_i32_0 : i32, i32
  }
  func.func @transform_3(%arg0: i32) -> (i32, i32) {
    %c0_i32 = arith.constant 0 : i32
    %c0_i32_0 = arith.constant 0 : i32
    %c0_i32_1 = arith.constant 0 : i32
    return %c0_i32, %c0_i32_0 : i32, i32
  }
  func.func @transform_4(%arg0: i32) -> (i32, i32, i32) {
    %c0_i32 = arith.constant 0 : i32
    %c0_i32_0 = arith.constant 0 : i32
    %c0_i32_1 = arith.constant 0 : i32
    return %arg0, %c0_i32, %c0_i32_0 : i32, i32, i32
  }
}

</mosaic_0001>

<llo_original>
// kernel: gnn_forward.1
$region0: #{gnn_forward.1}
  #allocation0 [shape = 'u32[]', space=smem, size = 0x4, offset = 0x4, fixed_abs, tag = 'smem constant byte address 0x4 - core index']
  #allocation1 [shape = 'u32[72,128]{1,0:T(1,128)}', space=vmem, size = 0x9000, scoped, tag = 'internal scratch']
  %s0 = inlined_call_operand.vmem [shape: f32[16,16], index: 0, kind: input, shape index: {}]
  %s1 = inlined_call_operand.vmem [shape: f32[1,16,8], index: 1, kind: input, shape index: {}]
  %s2 = inlined_call_operand.vmem [shape: f32[128,128], index: 2, kind: input, shape index: {}]
  %s3 = inlined_call_operand.vmem [shape: f32[8,128], index: 3, kind: input, shape index: {}]
  %s4 = inlined_call_operand.vmem [shape: f32[1,16,128], index: 4, kind: output, shape index: {}]
  %s5 = sld [smem:[#allocation0]]
  $region26: #{gnn_forward.1} parent=0
    _
  %s7 = ssub.s32 1, %s5
  %s8 = scalar_select 0, %s7, %s5
  // Predicated region
  $region2: #{gnn_forward.1} parent=0 // pred_check
    _
  $region3: #{gnn_forward.1} parent=0 // pred_check_branch
    %10 = sbr.rel (0) target = $region5
  $region4: #{gnn_forward.1} parent=0 // pred_region
    _
  $region5: #{gnn_forward.1} parent=0 // pred_fallthru
    _
  // Predicated region
  $region6: #{gnn_forward.1} parent=0 // pred_check
    _
  $region7: #{gnn_forward.1} parent=0 // pred_check_branch
    %12 = sbr.rel (0) target = $region9
  $region8: #{gnn_forward.1} parent=0 // pred_region
    _
  $region9: #{gnn_forward.1} parent=0 // pred_fallthru
    _
  // Predicated region
  $region10: #{gnn_forward.1} parent=0 // pred_check
    _
  $region11: #{gnn_forward.1} parent=0 // pred_check_branch
    %14 = sbr.rel (0) target = $region13
  $region12: #{gnn_forward.1} parent=0 // pred_region
    _
  $region13: #{gnn_forward.1} parent=0 // pred_fallthru
    _
  // Predicated region
  $region14: #{gnn_forward.1} parent=0 // pred_check
    _
  $region15: #{gnn_forward.1} parent=0 // pred_check_branch
    %16 = sbr.rel (0) target = $region17
  $region16: #{gnn_forward.1} parent=0 // pred_region
    _
  $region17: #{gnn_forward.1} parent=0 // pred_fallthru
    _
  %v17 = vld [vmem:[%s0] sm:$0xff]
  %v18 = vld [vmem:[%s0 + $0x8] sm:$0xff]
  %v19 = vld [vmem:[%s1] sm:$0xff]
  %v20 = vld [vmem:[%s1 + $0x8] sm:$0xff]
  %v21 = vld [vmem:[%s2] sm:$0xff]
  %v22 = vld [vmem:[%s2 + $0x8] sm:$0xff]
  %v23 = vld [vmem:[%s2 + $0x10] sm:$0xff]
  %v24 = vld [vmem:[%s2 + $0x18] sm:$0xff]
  %v25 = vld [vmem:[%s2 + $0x20] sm:$0xff]
  %v26 = vld [vmem:[%s2 + $0x28] sm:$0xff]
  %v27 = vld [vmem:[%s2 + $0x30] sm:$0xff]
  %v28 = vld [vmem:[%s2 + $0x38] sm:$0xff]
  %v29 = vld [vmem:[%s2 + $0x40] sm:$0xff]
  %v30 = vld [vmem:[%s2 + $0x48] sm:$0xff]
  %v31 = vld [vmem:[%s2 + $0x50] sm:$0xff]
  %v32 = vld [vmem:[%s2 + $0x58] sm:$0xff]
  %v33 = vld [vmem:[%s2 + $0x60] sm:$0xff]
  %v34 = vld [vmem:[%s2 + $0x68] sm:$0xff]
  %v35 = vld [vmem:[%s2 + $0x70] sm:$0xff]
  %v36 = vld [vmem:[%s3] sm:$0x1]
  %v37 = vld [vmem:[%s3 + $0x1] sm:$0x1]
  %v38 = vld [vmem:[%s3 + $0x2] sm:$0x1]
  %v39 = vld [vmem:[%s3 + $0x3] sm:$0x1]
  %vm40 = vcmask 130048
  %v42 = vsel %vm40, %v17, 0
  %v45 = vsel %vm40, %v18, 0
  %47 = vmatpush.msra.mxu0 0.0
  %48 = vmatpush.msra.mxu0 0.0
  %49 = vmatpush.msra.mxu0 0.0
  %50 = vmatpush.msra.mxu0 0.0
  %51 = vmatpush.msra.mxu0 0.0
  %52 = vmatpush.msra.mxu0 0.0
  %53 = vmatpush.msra.mxu0 0.0
  %54 = vmatpush.msra.mxu0 0.0
  %55 = vmatpush.msra.mxu0 0.0
  %56 = vmatpush.msra.mxu0 0.0
  %57 = vmatpush.msra.mxu0 0.0
  %58 = vmatpush.msra.mxu0 0.0
  %59 = vmatpush.msra.mxu0 0.0
  %60 = vmatpush.msra.mxu0 0.0
  %61 = vmatpush.msra.mxu0 %v20
  %62 = vmatpush.msra.mxu0 %v19
  %63 = vmatmul.f32.gmra.mxu0 %v42
  %v64 = vpop.f32.mrf.mxu0
  %v65 = vadd.f32 0.0, %v64
  %66 = vmatmul.f32.gmra.mxu0 %v45
  %v67 = vpop.f32.mrf.mxu0
  %v68 = vadd.f32 0.0, %v67
  %69 = vdwg.mxu0
  %v70 = vperm.slane %v36, 0
  %vm71 = vcmask 64512
  %v73 = vsel %vm71, %v65, 0
  %v76 = vsel %vm71, %v68, 0
  %78 = vmatpush.msra.mxu0 0.0
  %79 = vmatpush.msra.mxu0 0.0
  %80 = vmatpush.msra.mxu0 0.0
  %81 = vmatpush.msra.mxu0 0.0
  %82 = vmatpush.msra.mxu0 0.0
  %83 = vmatpush.msra.mxu0 0.0
  %84 = vmatpush.msra.mxu0 0.0
  %85 = vmatpush.msra.mxu0 0.0
  %86 = vmatpush.msra.mxu0 0.0
  %87 = vmatpush.msra.mxu0 0.0
  %88 = vmatpush.msra.mxu0 0.0
  %89 = vmatpush.msra.mxu0 0.0
  %90 = vmatpush.msra.mxu0 0.0
  %91 = vmatpush.msra.mxu0 0.0
  %92 = vmatpush.msra.mxu0 0.0
  %93 = vmatpush.msra.mxu0 %v21
  %94 = vmatmul.f32.gmra.mxu0 %v73
  %v95 = vpop.f32.mrf.mxu0
  %v96 = vadd.f32 %v70, %v95
  %97 = vmatmul.f32.gmra.mxu0 %v76
  %v98 = vpop.f32.mrf.mxu0
  %v99 = vadd.f32 %v70, %v98
  %100 = vdwg.mxu0
  %v101 = vmax.f32 %v96, 0.0
  %v102 = vmax.f32 %v99, 0.0
  %vm103 = vcmask 523264
  %v105 = vsel %vm103, %v101, 0
  %v108 = vsel %vm103, %v102, 0
  %110 = vmatpush.msra.mxu0 0.0
  %111 = vmatpush.msra.mxu0 0.0
  %112 = vmatpush.msra.mxu0 0.0
  %113 = vmatpush.msra.mxu0 0.0
  %114 = vmatpush.msra.mxu0 0.0
  %115 = vmatpush.msra.mxu0 0.0
  %116 = vmatpush.msra.mxu0 0.0
  %117 = vmatpush.msra.mxu0 0.0
  %118 = vmatpush.msra.mxu0 %v29
  %119 = vmatpush.msra.mxu0 %v28
  %120 = vmatpush.msra.mxu0 %v27
  %121 = vmatpush.msra.mxu0 %v26
  %122 = vmatpush.msra.mxu0 %v25
  %123 = vmatpush.msra.mxu0 %v24
  %124 = vmatpush.msra.mxu0 %v23
  %125 = vmatpush.msra.mxu0 %v22
  %126 = vmatmul.f32.gmra.mxu0 %v105
  %v127 = vpop.f32.mrf.mxu0
  %v128 = vadd.f32 0.0, %v127
  %129 = vmatmul.f32.gmra.mxu0 %v108
  %v130 = vpop.f32.mrf.mxu0
  %v131 = vadd.f32 0.0, %v130
  %132 = vdwg.mxu0
  %v133 = vperm.slane %v37, 0
  %134 = vmatpush.msra.mxu0 0.0
  %135 = vmatpush.msra.mxu0 0.0
  %136 = vmatpush.msra.mxu0 0.0
  %137 = vmatpush.msra.mxu0 0.0
  %138 = vmatpush.msra.mxu0 0.0
  %139 = vmatpush.msra.mxu0 0.0
  %140 = vmatpush.msra.mxu0 0.0
  %141 = vmatpush.msra.mxu0 0.0
  %142 = vmatpush.msra.mxu0 0.0
  %143 = vmatpush.msra.mxu0 0.0
  %144 = vmatpush.msra.mxu0 0.0
  %145 = vmatpush.msra.mxu0 0.0
  %146 = vmatpush.msra.mxu0 0.0
  %147 = vmatpush.msra.mxu0 0.0
  %148 = vmatpush.msra.mxu0 %v131
  %149 = vmatpush.msra.mxu0 %v128
  %150 = vmatmul.f32.gmra.mxu0 %v42
  %v151 = vpop.f32.mrf.mxu0
  %v152 = vadd.f32 %v133, %v151
  %153 = vmatmul.f32.gmra.mxu0 %v45
  %v154 = vpop.f32.mrf.mxu0
  %v155 = vadd.f32 %v133, %v154
  %156 = vdwg.mxu0
  %v157 = vmax.f32 %v152, 0.0
  %v158 = vmax.f32 %v155, 0.0
  %vm159 = vcmask 261120
  %v161 = vsel %vm159, %v157, 0
  %v164 = vsel %vm159, %v158, 0
  %166 = vmatpush.msra.mxu0 0.0
  %167 = vmatpush.msra.mxu0 0.0
  %168 = vmatpush.msra.mxu0 0.0
  %169 = vmatpush.msra.mxu0 0.0
  %170 = vmatpush.msra.mxu0 0.0
  %171 = vmatpush.msra.mxu0 0.0
  %172 = vmatpush.msra.mxu0 0.0
  %173 = vmatpush.msra.mxu0 0.0
  %174 = vmatpush.msra.mxu0 0.0
  %175 = vmatpush.msra.mxu0 0.0
  %176 = vmatpush.msra.mxu0 0.0
  %177 = vmatpush.msra.mxu0 0.0
  %178 = vmatpush.msra.mxu0 %v33
  %179 = vmatpush.msra.mxu0 %v32
  %180 = vmatpush.msra.mxu0 %v31
  %181 = vmatpush.msra.mxu0 %v30
  %182 = vmatmul.f32.gmra.mxu0 %v161
  %v183 = vpop.f32.mrf.mxu0
  %v184 = vadd.f32 0.0, %v183
  %185 = vmatmul.f32.gmra.mxu0 %v164
  %v186 = vpop.f32.mrf.mxu0
  %v187 = vadd.f32 0.0, %v186
  %188 = vdwg.mxu0
  %v189 = vperm.slane %v38, 0
  %190 = vmatpush.msra.mxu0 0.0
  %191 = vmatpush.msra.mxu0 0.0
  %192 = vmatpush.msra.mxu0 0.0
  %193 = vmatpush.msra.mxu0 0.0
  %194 = vmatpush.msra.mxu0 0.0
  %195 = vmatpush.msra.mxu0 0.0
  %196 = vmatpush.msra.mxu0 0.0
  %197 = vmatpush.msra.mxu0 0.0
  %198 = vmatpush.msra.mxu0 0.0
  %199 = vmatpush.msra.mxu0 0.0
  %200 = vmatpush.msra.mxu0 0.0
  %201 = vmatpush.msra.mxu0 0.0
  %202 = vmatpush.msra.mxu0 0.0
  %203 = vmatpush.msra.mxu0 0.0
  %204 = vmatpush.msra.mxu0 %v187
  %205 = vmatpush.msra.mxu0 %v184
  %206 = vmatmul.f32.gmra.mxu0 %v42
  %v207 = vpop.f32.mrf.mxu0
  %v208 = vadd.f32 %v189, %v207
  %209 = vmatmul.f32.gmra.mxu0 %v45
  %v210 = vpop.f32.mrf.mxu0
  %v211 = vadd.f32 %v189, %v210
  %212 = vdwg.mxu0
  %v213 = vmax.f32 %v208, 0.0
  %v214 = vmax.f32 %v211, 0.0
  %v216 = vsel %vm40, %v213, 0
  %v219 = vsel %vm40, %v214, 0
  %221 = vmatpush.msra.mxu0 0.0
  %222 = vmatpush.msra.mxu0 0.0
  %223 = vmatpush.msra.mxu0 0.0
  %224 = vmatpush.msra.mxu0 0.0
  %225 = vmatpush.msra.mxu0 0.0
  %226 = vmatpush.msra.mxu0 0.0
  %227 = vmatpush.msra.mxu0 0.0
  %228 = vmatpush.msra.mxu0 0.0
  %229 = vmatpush.msra.mxu0 0.0
  %230 = vmatpush.msra.mxu0 0.0
  %231 = vmatpush.msra.mxu0 0.0
  %232 = vmatpush.msra.mxu0 0.0
  %233 = vmatpush.msra.mxu0 0.0
  %234 = vmatpush.msra.mxu0 0.0
  %235 = vmatpush.msra.mxu0 %v35
  %236 = vmatpush.msra.mxu0 %v34
  %237 = vmatmul.f32.gmra.mxu0 %v216
  %v238 = vpop.f32.mrf.mxu0
  %v239 = vadd.f32 0.0, %v238
  %240 = vmatmul.f32.gmra.mxu0 %v219
  %v241 = vpop.f32.mrf.mxu0
  %v242 = vadd.f32 0.0, %v241
  %243 = vdwg.mxu0
  %v244 = vperm.slane %v39, 0
  %245 = vmatpush.msra.mxu0 0.0
  %246 = vmatpush.msra.mxu0 0.0
  %247 = vmatpush.msra.mxu0 0.0
  %248 = vmatpush.msra.mxu0 0.0
  %249 = vmatpush.msra.mxu0 0.0
  %250 = vmatpush.msra.mxu0 0.0
  %251 = vmatpush.msra.mxu0 0.0
  %252 = vmatpush.msra.mxu0 0.0
  %253 = vmatpush.msra.mxu0 0.0
  %254 = vmatpush.msra.mxu0 0.0
  %255 = vmatpush.msra.mxu0 0.0
  %256 = vmatpush.msra.mxu0 0.0
  %257 = vmatpush.msra.mxu0 0.0
  %258 = vmatpush.msra.mxu0 0.0
  %259 = vmatpush.msra.mxu0 %v242
  %260 = vmatpush.msra.mxu0 %v239
  %261 = vmatmul.f32.gmra.mxu0 %v42
  %v262 = vpop.f32.mrf.mxu0
  %v263 = vadd.f32 %v244, %v262
  %264 = vmatmul.f32.gmra.mxu0 %v45
  %v265 = vpop.f32.mrf.mxu0
  %v266 = vadd.f32 %v244, %v265
  %267 = vdwg.mxu0
  %268 = vst [vmem:[%s4] sm:$0xff] %v263
  %269 = vst [vmem:[%s4 + $0x8] sm:$0xff] %v266
  // Predicated region
  $region18: #{gnn_forward.1} parent=0 // pred_check
    _
  $region19: #{gnn_forward.1} parent=0 // pred_check_branch
    %271 = sbr.rel (0) target = $region21
  $region20: #{gnn_forward.1} parent=0 // pred_region
    _
  $region21: #{gnn_forward.1} parent=0 // pred_fallthru
    _
  // Predicated region
  $region22: #{gnn_forward.1} parent=0 // pred_check
    _
  $region23: #{gnn_forward.1} parent=0 // pred_check_branch
    %273 = sbr.rel (0) target = $region25
  $region24: #{gnn_forward.1} parent=0 // pred_region
    _
  $region25: #{gnn_forward.1} parent=0 // pred_fallthru
    _

</llo_original>
